<compile_context>
chip_gen: v6e
topology: v6e:2x2x1
jax: 0.10.0
libtpu: 0.0.40
codegen_flags: <defaults>
</compile_context>

<pallas_src>
import functools

import jax
import jax.numpy as jnp
from jax.experimental import pallas as pl
from jax.experimental.pallas import tpu as pltpu

HIDDEN = 12   # fixed by the module definition
LANE = 128    # lane-padded width for the hidden layer and the fused head output


def actor_critic_kernel(x_ref, w1_ref, wh_ref, b_ref, out_ref, *, out_size):
    # fc1 + ReLU. Hidden dim is zero-padded to LANE; padded columns stay 0
    # through the ReLU and contribute nothing to the head matmul (zero rows).
    x = x_ref[...]                                                   # bf16 [tb, D]
    h = jnp.dot(x, w1_ref[...], preferred_element_type=jnp.float32) + b_ref[0:1, :]
    h = jnp.maximum(h, 0.0)                                          # f32 [tb, 128]

    # Fused heads in one bf16 MXU pass. Columns [0, out_size) = actor logits,
    # column out_size = critic value, remaining columns are zero padding.
    z = jnp.dot(h.astype(jnp.bfloat16), wh_ref[...],
                preferred_element_type=jnp.float32) + b_ref[1:2, :]

    # Numerically-stable softmax over the actor columns only. Mask the logits
    # *before* the exp so non-policy columns can never produce inf/NaN.
    col = jax.lax.broadcasted_iota(jnp.int32, z.shape, 1)
    is_policy = col < out_size
    neg_big = jnp.float32(-1e30)
    z_masked = jnp.where(is_policy, z, neg_big)
    m = jnp.max(z_masked, axis=-1, keepdims=True)
    e = jnp.exp(z_masked - m)                      # masked columns -> exactly 0
    denom = jnp.sum(e, axis=-1, keepdims=True)
    probs = e / denom                              # exact divide (one per row)

    # Policy in actor columns; everything else keeps raw z (value column keeps
    # the critic output, padded columns are sliced off in the wrapper).
    out_ref[...] = jnp.where(is_policy, probs, z).astype(out_ref.dtype)


def pack_params(p, input_size, out_size):
    """Pack the 6 torch-style tensors into 3 lane-padded kernel operands."""
    assert out_size + 1 <= LANE, "fused head slab must fit in 128 lanes"
    w1p = jnp.zeros((input_size, LANE), jnp.float32).at[:, :HIDDEN].set(p["w1"])
    whp = (
        jnp.zeros((LANE, LANE), jnp.float32)
        .at[:HIDDEN, :out_size].set(p["wa"])
        .at[:HIDDEN, out_size].set(p["wc"][:, 0])
    )
    ball = (
        jnp.zeros((8, LANE), jnp.float32)          # padded to a full (8,128) tile
        .at[0, :HIDDEN].set(p["b1"][0])
        .at[1, :out_size].set(p["ba"][0])
        .at[1, out_size].set(p["bc"][0, 0])
    )
    # Weights go to the MXU in bf16; biases stay f32 (added post-matmul).
    return {"w1p": w1p.astype(jnp.bfloat16),
            "whp": whp.astype(jnp.bfloat16),
            "ball": ball}


def _choose_batch_tile(B, block_b):
    """Pick the batch tile: big tiles for pipelining, >=2 blocks for v7x megacore."""
    if B > block_b:
        return block_b                              # many blocks, tb already 8-aligned
    if B > 512:
        # Moderate batch that would otherwise be a single block: split in two so
        # both v7x TensorCores are fed. Keep the tile sublane-aligned (mult of 8).
        half = (B + 1) // 2
        return ((half + 7) // 8) * 8
    return B                                        # tiny batch: one full-array block


def actor_critic_forward(x, packed, out_size, *, block_b=1024):
    """x: [B, input_size]. Returns (policy [B, out_size] f32, value [B, 1] f32)."""
    B, D = x.shape
    w1p, whp, ball = packed["w1p"], packed["whp"], packed["ball"]
    x = x.astype(jnp.bfloat16)

    tb = _choose_batch_tile(B, block_b)
    grid = (pl.cdiv(B, tb),)                        # ragged last block masked by Pallas

    cp_kwargs = dict(dimension_semantics=("parallel",))
    if tb > 4096:
        # v5e default scoped VMEM is 16 MiB; raise it only when the tile sweep
        # actually needs it (still well under v7x's 64 MiB physical VMEM).
        cp_kwargs["vmem_limit_bytes"] = 64 << 20

    kernel = functools.partial(actor_critic_kernel, out_size=out_size)
    out = pl.pallas_call(
        kernel,
        out_shape=jax.ShapeDtypeStruct((B, LANE), jnp.bfloat16),
        grid=grid,
        in_specs=[
            pl.BlockSpec((tb, D), lambda i: (i, 0)),        # x: blocked over batch
            pl.BlockSpec((D, LANE), lambda i: (0, 0)),      # w1 (padded): resident
            pl.BlockSpec((LANE, LANE), lambda i: (0, 0)),   # fused heads: resident
            pl.BlockSpec((8, LANE), lambda i: (0, 0)),      # fused biases: resident
        ],
        out_specs=pl.BlockSpec((tb, LANE), lambda i: (i, 0)),
        compiler_params=pltpu.CompilerParams(**cp_kwargs),
    )(x, w1p, whp, ball)

    # Narrow slices (out_size+1 columns) back to f32 — tiny compared to the slab.
    policy = out[:, :out_size].astype(jnp.float32)
    value = out[:, out_size:out_size + 1].astype(jnp.float32)
    return policy, value


def init_params(key, input_size, output_size):
    """Deterministic init mimicking nn.Linear's U(-1/sqrt(fan_in), 1/sqrt(fan_in))."""
    ks = jax.random.split(key, 6)

    def linear(kw, kb, fan_in, fan_out):
        bound = 1.0 / jnp.sqrt(jnp.float32(fan_in))
        w = jax.random.uniform(kw, (fan_in, fan_out), jnp.float32, -bound, bound)
        b = jax.random.uniform(kb, (1, fan_out), jnp.float32, -bound, bound)
        return w, b

    w1, b1 = linear(ks[0], ks[1], input_size, HIDDEN)
    wa, ba = linear(ks[2], ks[3], HIDDEN, output_size)
    wc, bc = linear(ks[4], ks[5], HIDDEN, 1)
    return {"w1": w1, "b1": b1, "wa": wa, "ba": ba, "wc": wc, "bc": bc}


def reference_forward(x, p):
    h = jnp.maximum(x @ p["w1"] + p["b1"], 0.0)
    policy = jax.nn.softmax(h @ p["wa"] + p["ba"], axis=-1)
    value = h @ p["wc"] + p["bc"]
    return policy, value


if __name__ == "__main__":
    # Pacman env on a 5x5 grid -> observation_space.shape[0] = 25 (flattened grid),
    # action_space.n = 4 (up/down/left/right). Batch of 2 observations.
    batch = 2
    input_size = 25
    output_size = 4

    key = jax.random.PRNGKey(0)
    k_x, k_p = jax.random.split(key)
    x = jax.random.normal(k_x, (batch, input_size), jnp.float32)
    params = init_params(k_p, input_size, output_size)
    packed = pack_params(params, input_size, output_size)

    policy, value = actor_critic_forward(x, packed, output_size)
    policy, value = jax.block_until_ready((policy, value))

    # sanity check against plain-JAX f32 reference (tolerances reflect bf16
    # MXU inputs and the bf16 output slab; softmax math itself is exact f32)
    ref_policy, ref_value = reference_forward(x, params)
    assert policy.shape == (batch, output_size)
    assert value.shape == (batch, 1)
    assert jnp.allclose(policy, ref_policy, atol=2e-2, rtol=2e-2)
    assert jnp.allclose(value, ref_value, atol=3e-2, rtol=5e-2)
    assert jnp.allclose(jnp.sum(policy, axis=-1), 1.0, atol=2e-2)

    print("KERNEL_OK")
</pallas_src>

<mosaic_0001>
module attributes {stable_mosaic.version = 11 : i64} {
  func.func @actor_critic_kernel(%arg0: i32, %arg1: memref<2x25xbf16, #tpu.memory_space<vmem>>, %arg2: memref<25x128xbf16, #tpu.memory_space<vmem>>, %arg3: memref<128x128xbf16, #tpu.memory_space<vmem>>, %arg4: memref<8x128xf32, #tpu.memory_space<vmem>>, %arg5: memref<2x128xbf16, #tpu.memory_space<vmem>>) attributes {dimension_semantics = [#tpu.dimension_semantics<parallel>], iteration_bounds = array<i64: 1>, scalar_prefetch = 0 : i64, scratch_operands = 0 : i64, tpu.core_type = #tpu.core_type<tc>, window_params = [{transform_indices = @transform_0, window_bounds = array<i64: 2, 25>}, {pipeline_mode = #tpu.pipeline_mode<synchronous>, transform_indices = @transform_1, window_bounds = array<i64: 25, 128>}, {pipeline_mode = #tpu.pipeline_mode<synchronous>, transform_indices = @transform_2, window_bounds = array<i64: 128, 128>}, {pipeline_mode = #tpu.pipeline_mode<synchronous>, transform_indices = @transform_3, window_bounds = array<i64: 8, 128>}, {transform_indices = @transform_4, window_bounds = array<i64: 2, 128>}]} {
    %c0 = arith.constant 0 : index
    %c0_0 = arith.constant 0 : index
    %0 = vector.load %arg1[%c0, %c0_0] : memref<2x25xbf16, #tpu.memory_space<vmem>>, vector<2x25xbf16>
    %c0_1 = arith.constant 0 : index
    %c0_2 = arith.constant 0 : index
    %1 = vector.load %arg2[%c0_1, %c0_2] : memref<25x128xbf16, #tpu.memory_space<vmem>>, vector<25x128xbf16>
    %cst = arith.constant dense<0.000000e+00> : vector<2x128xf32>
    %2 = tpu.matmul %0, %1, %cst {dimension_numbers = #tpu.dot_dimension_numbers<[1], [0], [0], [1], [0, 0, 1, 1], [], []>} : vector<2x25xbf16>, vector<25x128xbf16>, vector<2x128xf32> -> vector<2x128xf32>
    %c0_3 = arith.constant 0 : index
    %c0_4 = arith.constant 0 : index
    %3 = vector.load %arg4[%c0_3, %c0_4] : memref<8x128xf32, #tpu.memory_space<vmem>>, vector<1x128xf32>
    %4 = vector.broadcast %3 : vector<1x128xf32> to vector<2x128xf32>
    %5 = arith.addf %2, %4 : vector<2x128xf32>
    %cst_5 = arith.constant 0.000000e+00 : f32
    %6 = vector.broadcast %cst_5 : f32 to vector<2x128xf32>
    %7 = arith.maximumf %5, %6 : vector<2x128xf32>
    %8 = arith.truncf %7 : vector<2x128xf32> to vector<2x128xbf16>
    %c0_6 = arith.constant 0 : index
    %c0_7 = arith.constant 0 : index
    %9 = vector.load %arg3[%c0_6, %c0_7] : memref<128x128xbf16, #tpu.memory_space<vmem>>, vector<128x128xbf16>
    %cst_8 = arith.constant dense<0.000000e+00> : vector<2x128xf32>
    %10 = tpu.matmul %8, %9, %cst_8 {dimension_numbers = #tpu.dot_dimension_numbers<[1], [0], [0], [1], [0, 0, 1, 1], [], []>} : vector<2x128xbf16>, vector<128x128xbf16>, vector<2x128xf32> -> vector<2x128xf32>
    %c1 = arith.constant 1 : index
    %c0_9 = arith.constant 0 : index
    %11 = vector.load %arg4[%c1, %c0_9] : memref<8x128xf32, #tpu.memory_space<vmem>>, vector<1x128xf32>
    %12 = vector.broadcast %11 : vector<1x128xf32> to vector<2x128xf32>
    %13 = arith.addf %10, %12 : vector<2x128xf32>
    %14 = tpu.iota {dimensions = array<i32: 1>} : vector<2x128xi32>
    %c4_i32 = arith.constant 4 : i32
    %15 = vector.broadcast %c4_i32 : i32 to vector<2x128xi32>
    %16 = arith.cmpi slt, %14, %15 : vector<2x128xi32>
    %cst_10 = arith.constant -1.000000e+30 : f32
    %17 = vector.broadcast %cst_10 : f32 to vector<2x128xf32>
    %18 = arith.select %16, %13, %17 : vector<2x128xi1>, vector<2x128xf32>
    %cst_11 = arith.constant dense<0xFF800000> : vector<2xf32>
    %19 = vector.multi_reduction <maximumf>, %18, %cst_11 [1] : vector<2x128xf32> to vector<2xf32>
    %20 = vector.shape_cast %19 : vector<2xf32> to vector<2x1xf32>
    %21 = vector.broadcast %20 : vector<2x1xf32> to vector<2x128xf32>
    %22 = arith.subf %18, %21 : vector<2x128xf32>
    %23 = math.exp %22 : vector<2x128xf32>
    %cst_12 = arith.constant dense<0.000000e+00> : vector<2xf32>
    %24 = vector.multi_reduction <add>, %23, %cst_12 [1] : vector<2x128xf32> to vector<2xf32>
    %25 = vector.shape_cast %24 : vector<2xf32> to vector<2x1xf32>
    %26 = vector.broadcast %25 : vector<2x1xf32> to vector<2x128xf32>
    %27 = arith.divf %23, %26 : vector<2x128xf32>
    %28 = arith.select %16, %27, %13 : vector<2x128xi1>, vector<2x128xf32>
    %29 = arith.truncf %28 : vector<2x128xf32> to vector<2x128xbf16>
    %c0_13 = arith.constant 0 : index
    %c0_14 = arith.constant 0 : index
    %30 = vector.load %arg5[%c0_13, %c0_14] : memref<2x128xbf16, #tpu.memory_space<vmem>>, vector<2x128xbf16>
    tpu.vector_store %arg5[%c0_13, %c0_14], %29 {strides = array<i32>} : memref<2x128xbf16, #tpu.memory_space<vmem>>, vector<2x128xbf16>,
    return
  }
  func.func @transform_0(%arg0: i32) -> (i32, i32) {
    %c0_i32 = arith.constant 0 : i32
    %c0_i32_0 = arith.constant 0 : i32
    return %arg0, %c0_i32 : i32, i32
  }
  func.func @transform_1(%arg0: i32) -> (i32, i32) {
    %c0_i32 = arith.constant 0 : i32
    %c0_i32_0 = arith.constant 0 : i32
    %c0_i32_1 = arith.constant 0 : i32
    return %c0_i32, %c0_i32_0 : i32, i32
  }
  func.func @transform_2(%arg0: i32) -> (i32, i32) {
    %c0_i32 = arith.constant 0 : i32
    %c0_i32_0 = arith.constant 0 : i32
    %c0_i32_1 = arith.constant 0 : i32
    return %c0_i32, %c0_i32_0 : i32, i32
  }
  func.func @transform_3(%arg0: i32) -> (i32, i32) {
    %c0_i32 = arith.constant 0 : i32
    %c0_i32_0 = arith.constant 0 : i32
    %c0_i32_1 = arith.constant 0 : i32
    return %c0_i32, %c0_i32_0 : i32, i32
  }
  func.func @transform_4(%arg0: i32) -> (i32, i32) {
    %c0_i32 = arith.constant 0 : i32
    %c0_i32_0 = arith.constant 0 : i32
    return %arg0, %c0_i32 : i32, i32
  }
}

</mosaic_0001>

<llo_original>
// kernel: tpu_custom_call.1
$region0: #{tpu_custom_call.1}
  #allocation0 [shape = 'u32[]', space=smem, size = 0x4, offset = 0x4, fixed_abs, tag = 'smem constant byte address 0x4 - core index']
  #allocation1 [shape = 'u32[144,128]{1,0:T(1,128)}', space=vmem, size = 0x12000, scoped, tag = 'internal scratch']
  %s0 = inlined_call_operand.hbm [shape: bf16[2,25], index: 0, kind: input, shape index: {}]
  %s1 = inlined_call_operand.hbm [shape: bf16[25,128], index: 1, kind: input, shape index: {}]
  %s2 = inlined_call_operand.hbm [shape: bf16[128,128], index: 2, kind: input, shape index: {}]
  %s3 = inlined_call_operand.hbm [shape: f32[8,128], index: 3, kind: input, shape index: {}]
  %s4 = inlined_call_operand.hbm [shape: bf16[2,128], index: 4, kind: output, shape index: {}]
  %s5 = sld [smem:[#allocation0]]
  $region42: #{tpu_custom_call.1} parent=0
    _
  %s7 = ssub.s32 1, %s5
  %s8 = scalar_select 0, %s7, %s5
  $region1: #{tpu_custom_call.1} parent=0
    #allocation2 [shape = 'u8[512]{0}', space=vmem, size = 0x400, scoped, tag = 'input window, operand 0, single buffered']
    #allocation3 [shape = 's32[1]{0}', space=sflag, size = 0x4, scoped, tag = 'scoped memory for tpu_custom_call.1']
    #allocation4 [shape = 's32[1]{0}', space=sflag, size = 0x4, scoped, tag = 'scoped memory for tpu_custom_call.1']
    #allocation5 [shape = 'u8[8192]{0}', space=vmem, size = 0x2000, scoped, tag = 'input window, operand 1, single buffered']
    #allocation6 [shape = 's32[1]{0}', space=sflag, size = 0x4, scoped, tag = 'scoped memory for tpu_custom_call.1']
    #allocation7 [shape = 'u8[32768]{0}', space=vmem, size = 0x8000, scoped, tag = 'input window, operand 2, single buffered']
    #allocation8 [shape = 'u8[4096]{0}', space=vmem, size = 0x1000, scoped, tag = 'input window, operand 3, single buffered']
    #allocation9 [shape = 's32[1]{0}', space=sflag, size = 0x4, scoped, tag = 'scoped memory for tpu_custom_call.1']
    #allocation10 [shape = 'u8[512]{0}', space=vmem, size = 0x400, scoped, tag = 'output window, operand 0, single buffered']
    %9 = vsyncpa [#allocation3], 0
    %10 = vsyncpa [#allocation6], 0
    %11 = vsyncpa [#allocation9], 0
    %12 = vsyncpa [#allocation4], 0
    // Predicated region
    $region2: #{tpu_custom_call.1} parent=1 // pred_check
      _
    $region3: #{tpu_custom_call.1} parent=1 // pred_check_branch
      %14 = sbr.rel (0) target = $region5
    $region4: #{tpu_custom_call.1} parent=1 // pred_region
      %s16 = ssub.s32 16, 16
      %17 = vsyncadd [#allocation3], %s16
      %s19 = sshll.u32 [#allocation2], 4
      %s20 = int_to_ptr.vmem [resolvable:$true] %s19
      %22 = dma.hbm_to_vmem [thread:$0]  %s0, 16, %s20, [#allocation3]
    $region5: #{tpu_custom_call.1} parent=1 // pred_fallthru
      _
    // Predicated region
    $region6: #{tpu_custom_call.1} parent=1 // pred_check
      _
    $region7: #{tpu_custom_call.1} parent=1 // pred_check_branch
      %24 = sbr.rel (0) target = $region9
    $region8: #{tpu_custom_call.1} parent=1 // pred_region
      %s26 = ssub.s32 256, 256
      %27 = vsyncadd [#allocation6], %s26
      %s28 = sshll.u32 [#allocation5], 4
      %s29 = int_to_ptr.vmem [resolvable:$true] %s28
      %34 = dma.hbm_to_vmem [thread:$0]  %s1, 256, %s29, [#allocation6], 64, 64, 4
    $region9: #{tpu_custom_call.1} parent=1 // pred_fallthru
      _
    // Predicated region
    $region10: #{tpu_custom_call.1} parent=1 // pred_check
      _
    $region11: #{tpu_custom_call.1} parent=1 // pred_check_branch
      %36 = sbr.rel (0) target = $region13
    $region12: #{tpu_custom_call.1} parent=1 // pred_region
      %s38 = ssub.s32 1024, 1024
      %39 = vsyncadd [#allocation6], %s38
      %s40 = sshll.u32 [#allocation7], 4
      %s41 = int_to_ptr.vmem [resolvable:$true] %s40
      %46 = dma.hbm_to_vmem [thread:$0]  %s2, 1024, %s41, [#allocation6], 64, 64, 4
    $region13: #{tpu_custom_call.1} parent=1 // pred_fallthru
      _
    // Predicated region
    $region14: #{tpu_custom_call.1} parent=1 // pred_check
      _
    $region15: #{tpu_custom_call.1} parent=1 // pred_check_branch
      %48 = sbr.rel (0) target = $region17
    $region16: #{tpu_custom_call.1} parent=1 // pred_region
      %s50 = ssub.s32 128, 128
      %51 = vsyncadd [#allocation9], %s50
      %s53 = sshll.u32 [#allocation8], 4
      %s54 = int_to_ptr.vmem [resolvable:$true] %s53
      %56 = dma.hbm_to_vmem [thread:$0]  %s3, 128, %s54, [#allocation9]
    $region17: #{tpu_custom_call.1} parent=1 // pred_fallthru
      _
    // Predicated region
    $region18: #{tpu_custom_call.1} parent=1 // pred_check
      _
    $region19: #{tpu_custom_call.1} parent=1 // pred_check_branch
      %58 = sbr.rel (0) target = $region21
    $region20: #{tpu_custom_call.1} parent=1 // pred_region
      %59 = dma.done [#allocation3], 16
    $region21: #{tpu_custom_call.1} parent=1 // pred_fallthru
      _
    // Predicated region
    $region22: #{tpu_custom_call.1} parent=1 // pred_check
      _
    $region23: #{tpu_custom_call.1} parent=1 // pred_check_branch
      %61 = sbr.rel (0) target = $region25
    $region24: #{tpu_custom_call.1} parent=1 // pred_region
      %62 = dma.done [#allocation6], 256
    $region25: #{tpu_custom_call.1} parent=1 // pred_fallthru
      _
    // Predicated region
    $region26: #{tpu_custom_call.1} parent=1 // pred_check
      _
    $region27: #{tpu_custom_call.1} parent=1 // pred_check_branch
      %64 = sbr.rel (0) target = $region29
    $region28: #{tpu_custom_call.1} parent=1 // pred_region
      %65 = dma.done [#allocation6], 1024
    $region29: #{tpu_custom_call.1} parent=1 // pred_fallthru
      _
    // Predicated region
    $region30: #{tpu_custom_call.1} parent=1 // pred_check
      _
    $region31: #{tpu_custom_call.1} parent=1 // pred_check_branch
      %67 = sbr.rel (0) target = $region33
    $region32: #{tpu_custom_call.1} parent=1 // pred_region
      %68 = dma.done [#allocation9], 128
    $region33: #{tpu_custom_call.1} parent=1 // pred_fallthru
      _
    %v70 = vld [vmem:[#allocation2] sm:$0x1]
    %v71 = vld [vmem:[#allocation5] sm:$0xf]
    %v72 = vld [vmem:[#allocation5 + $0x4] sm:$0xf]
    %v73 = vld [vmem:[#allocation5 + $0x8] sm:$0xf]
    %v74 = vld [vmem:[#allocation5 + $0xc] sm:$0x1]
    %v75 = vld [vmem:[#allocation8] sm:$0x1]
    %v76 = vlaneseq
    %v77 = vshrl.u32 %v76, 7
    %v78 = vsub.s32 0, %v77
    %v79 = vrot.slane %v75, %v78
    %v84 = vunpack.c.l.b16 %v71
    %v85 = vunpack.c.l.b16 %v72
    %v86 = vunpack.c.l.b16 %v73
    %v87 = vunpack.c.l.b16 %v74
    %v88 = vpack.c.b16 %v85, %v84
    %v89 = vpack.c.b16 %v87, %v86
    %vm91 = vcmask 203776
    %v93 = vsel %vm91, %v70, 0
    %vm95 = vcmask 1043456
    %vm96 = vcmask 1044480
    %v97 = vsel %vm95, 4294967295, 65535
    %v98 = vsel %vm96, %v97, 0
    %v100 = vand.u32 %v89, %v98
    %102 = vmatprep.subr.bf16.mxu0 0
    %103 = vmatpush1.bf16.msra.mxu0 0
    %104 = vmatprep.subr.bf16.mxu0 0
    %105 = vmatpush1.bf16.msra.mxu0 0
    %106 = vmatprep.subr.bf16.mxu0 0
    %107 = vmatpush1.bf16.msra.mxu0 0
    %108 = vmatprep.subr.bf16.mxu0 0
    %109 = vmatpush1.bf16.msra.mxu0 0
    %110 = vmatprep.subr.bf16.mxu0 0
    %111 = vmatpush1.bf16.msra.mxu0 0
    %112 = vmatprep.subr.bf16.mxu0 0
    %113 = vmatpush1.bf16.msra.mxu0 0
    %114 = vmatprep.subr.bf16.mxu0 0
    %115 = vmatpush1.bf16.msra.mxu0 %v100
    %116 = vmatprep.subr.bf16.mxu0 0
    %117 = vmatpush1.bf16.msra.mxu0 %v88
    %118 = vmatprep.subr.bf16.mxu0 0
    %119 = vmatpush2.bf16.msra.mxu0 0
    %120 = vmatprep.subr.bf16.mxu0 0
    %121 = vmatpush2.bf16.msra.mxu0 0
    %122 = vmatprep.subr.bf16.mxu0 0
    %123 = vmatpush2.bf16.msra.mxu0 0
    %124 = vmatprep.subr.bf16.mxu0 0
    %125 = vmatpush2.bf16.msra.mxu0 0
    %126 = vmatprep.subr.bf16.mxu0 0
    %127 = vmatpush2.bf16.msra.mxu0 0
    %128 = vmatprep.subr.bf16.mxu0 0
    %129 = vmatpush2.bf16.msra.mxu0 0
    %130 = vmatprep.subr.bf16.mxu0 0
    %131 = vmatpush2.bf16.msra.mxu0 0
    %132 = vmatprep.subr.bf16.mxu0 0
    %133 = vmatpush2.bf16.msra.mxu0 0
    %134 = vmatprep.mubr.bf16.mxu0 0
    %135 = vmatmul.mubr.bf16.gmra.mxu0 %v93
    %v136 = vpop.f32.mrf.mxu0
    %v137 = vadd.f32 %v79, %v136
    %v138 = vpop.f32.mrf.mxu0
    %v139 = vpop.f32.mrf.mxu0
    %v140 = vpop.f32.mrf.mxu0
    %141 = vdwg.mxu0
    %v142 = vmax.f32 %v137, 0.0
    %v143 = vpack.c.bf16 %v142, %v142
    %v144 = vld [vmem:[#allocation7] sm:$0xf]
    %v145 = vld [vmem:[#allocation7 + $0x4] sm:$0xf]
    %v146 = vld [vmem:[#allocation7 + $0x8] sm:$0xf]
    %v147 = vld [vmem:[#allocation7 + $0xc] sm:$0xf]
    %v148 = vld [vmem:[#allocation7 + $0x10] sm:$0xf]
    %v149 = vld [vmem:[#allocation7 + $0x14] sm:$0xf]
    %v150 = vld [vmem:[#allocation7 + $0x18] sm:$0xf]
    %v151 = vld [vmem:[#allocation7 + $0x1c] sm:$0xf]
    %v152 = vld [vmem:[#allocation7 + $0x20] sm:$0xf]
    %v153 = vld [vmem:[#allocation7 + $0x24] sm:$0xf]
    %v154 = vld [vmem:[#allocation7 + $0x28] sm:$0xf]
    %v155 = vld [vmem:[#allocation7 + $0x2c] sm:$0xf]
    %v156 = vld [vmem:[#allocation7 + $0x30] sm:$0xf]
    %v157 = vld [vmem:[#allocation7 + $0x34] sm:$0xf]
    %v158 = vld [vmem:[#allocation7 + $0x38] sm:$0xf]
    %v159 = vld [vmem:[#allocation7 + $0x3c] sm:$0xf]
    %v160 = vld [vmem:[#allocation8 + $0x1] sm:$0x1]
    %v161 = vlaneseq
    %v162 = vshrl.u32 %v161, 7
    %v163 = vsub.s32 0, %v162
    %v164 = vrot.slane %v160, %v163
    %v181 = vunpack.c.l.b16 %v144
    %v182 = vunpack.c.l.b16 %v145
    %v183 = vunpack.c.l.b16 %v146
    %v184 = vunpack.c.l.b16 %v147
    %v185 = vunpack.c.l.b16 %v148
    %v186 = vunpack.c.l.b16 %v149
    %v187 = vunpack.c.l.b16 %v150
    %v188 = vunpack.c.l.b16 %v151
    %v189 = vunpack.c.l.b16 %v152
    %v190 = vunpack.c.l.b16 %v153
    %v191 = vunpack.c.l.b16 %v154
    %v192 = vunpack.c.l.b16 %v155
    %v193 = vunpack.c.l.b16 %v156
    %v194 = vunpack.c.l.b16 %v157
    %v195 = vunpack.c.l.b16 %v158
    %v196 = vunpack.c.l.b16 %v159
    %v197 = vpack.c.b16 %v182, %v181
    %v198 = vpack.c.b16 %v184, %v183
    %v199 = vpack.c.b16 %v186, %v185
    %v200 = vpack.c.b16 %v188, %v187
    %v201 = vpack.c.b16 %v190, %v189
    %v202 = vpack.c.b16 %v192, %v191
    %v203 = vpack.c.b16 %v194, %v193
    %v204 = vpack.c.b16 %v196, %v195
    %213 = vmatprep.subr.bf16.mxu0 0
    %214 = vmatpush1.bf16.msra.mxu0 %v204
    %215 = vmatprep.subr.bf16.mxu0 0
    %216 = vmatpush1.bf16.msra.mxu0 %v203
    %217 = vmatprep.subr.bf16.mxu0 0
    %218 = vmatpush1.bf16.msra.mxu0 %v202
    %219 = vmatprep.subr.bf16.mxu0 0
    %220 = vmatpush1.bf16.msra.mxu0 %v201
    %221 = vmatprep.subr.bf16.mxu0 0
    %222 = vmatpush1.bf16.msra.mxu0 %v200
    %223 = vmatprep.subr.bf16.mxu0 0
    %224 = vmatpush1.bf16.msra.mxu0 %v199
    %225 = vmatprep.subr.bf16.mxu0 0
    %226 = vmatpush1.bf16.msra.mxu0 %v198
    %227 = vmatprep.subr.bf16.mxu0 0
    %228 = vmatpush1.bf16.msra.mxu0 %v197
    %229 = vmatprep.subr.bf16.mxu0 0
    %230 = vmatpush2.bf16.msra.mxu0 0
    %231 = vmatprep.subr.bf16.mxu0 0
    %232 = vmatpush2.bf16.msra.mxu0 0
    %233 = vmatprep.subr.bf16.mxu0 0
    %234 = vmatpush2.bf16.msra.mxu0 0
    %235 = vmatprep.subr.bf16.mxu0 0
    %236 = vmatpush2.bf16.msra.mxu0 0
    %237 = vmatprep.subr.bf16.mxu0 0
    %238 = vmatpush2.bf16.msra.mxu0 0
    %239 = vmatprep.subr.bf16.mxu0 0
    %240 = vmatpush2.bf16.msra.mxu0 0
    %241 = vmatprep.subr.bf16.mxu0 0
    %242 = vmatpush2.bf16.msra.mxu0 0
    %243 = vmatprep.subr.bf16.mxu0 0
    %244 = vmatpush2.bf16.msra.mxu0 0
    %245 = vmatprep.mubr.bf16.mxu0 0
    %246 = vmatmul.mubr.bf16.gmra.mxu0 %v143
    %v247 = vpop.f32.mrf.mxu0
    %v248 = vadd.f32 %v164, %v247
    %v249 = vpop.f32.mrf.mxu0
    %v250 = vpop.f32.mrf.mxu0
    %v251 = vpop.f32.mrf.mxu0
    %252 = vdwg.mxu0
    %v253 = vlaneseq
    %v254 = vand.u32 %v253, 127
    %vm255 = vcmp.lt.s32.totalorder %v254, 4
    %v256 = vsel %vm255, %v248, -1e+30
    %vm257 = vcmask 1041408
    %v258 = vsel %vm257, %v256, -inf
    %259 = vmax.xlane.f32.xlu0 %v258
    %v260 = vpop.xlane.xlu0 %259
    %v261 = vsub.f32 %v256, %v260
    %v262 = vmul.f32 %v261, 1.442695
    %v263 = vpow.pop %v262
    %v264 = vsel %vm257, %v263, 0.0
    %265 = vadd.xlane.f32.xlu0 %v264
    %v266 = vpop.xlane.xlu0 %265
    %v267 = vrcp.pop %v266
    %v268 = vmul.f32 %v263, %v267
    %v269 = vsel %vm255, %v268, %v248
    %v270 = vpack.c.bf16 %v269, %v269
    %271 = vst [vmem:[#allocation10] sm:$0x1] %v270
    // Predicated region
    $region34: #{tpu_custom_call.1} parent=1 // pred_check
      _
    $region35: #{tpu_custom_call.1} parent=1 // pred_check_branch
      %273 = sbr.rel (0) target = $region37
    $region36: #{tpu_custom_call.1} parent=1 // pred_region
      %s275 = ssub.s32 16, 16
      %276 = vsyncadd [#allocation4], %s275
      %s278 = sshll.u32 [#allocation10], 4
      %s279 = int_to_ptr.vmem [resolvable:$true] %s278
      %281 = dma.vmem_to_hbm [thread:$0]  %s279, 16, %s4, [#allocation4]
    $region37: #{tpu_custom_call.1} parent=1 // pred_fallthru
      _
    // Predicated region
    $region38: #{tpu_custom_call.1} parent=1 // pred_check
      _
    $region39: #{tpu_custom_call.1} parent=1 // pred_check_branch
      %283 = sbr.rel (0) target = $region41
    $region40: #{tpu_custom_call.1} parent=1 // pred_region
      %284 = dma.done [#allocation4], 16
    $region41: #{tpu_custom_call.1} parent=1 // pred_fallthru
      _
    %285 = vsyncpa [#allocation3], 1
    %286 = vsyncpa [#allocation6], 1
    %287 = vsyncpa [#allocation9], 1
    %288 = vsyncpa [#allocation4], 1

</llo_original>
